<compile_context>
chip_gen: v7x
topology: tpu7x:2x2x1
jax: 0.10.0
libtpu: 0.0.40
codegen_flags: <defaults>
</compile_context>

<pallas_src>
import jax
import jax.numpy as jnp
from jax.experimental import pallas as pl
from jax.experimental.pallas import tpu as pltpu


def attflat_kernel(x_ref, mask_ref, w1_ref, b1_ref, w2_ref, b2_ref,
                   wm_ref, bm_ref, o_ref):
    # x_ref:    (TB, S, H)
    # mask_ref: (TB, S, 1)    1.0 -> masked position
    # w1_ref:   (H, MID)      b1_ref: (1, MID)
    # w2_ref:   (1, MID)      glimpse-0 column of the MLP output layer, as a row
    # b2_ref:   (1, 1)
    # wm_ref:   (H, OUTP)     bm_ref: (1, OUTP)   (OUT zero-padded to 128 lanes)
    # o_ref:    (TB, OUTP)
    tb, s, h = x_ref.shape

    x3 = x_ref[...]                                       # (TB, S, H)
    x2 = x3.reshape(tb * s, h)                            # (TB*S, H): fill MXU M dim

    # MLP: Linear -> ReLU -> (dropout = identity)
    hid = jnp.dot(x2, w1_ref[...],
                  preferred_element_type=jnp.float32) + b1_ref[...]   # (TB*S, MID)
    hid = jnp.maximum(hid, 0.0)

    # Glimpse logits: out_size == 1, so use VPU multiply + lane reduce instead
    # of an N=1 MXU matmul.
    mid = hid.shape[-1]
    hid3 = hid.reshape(tb, s, mid)                        # (TB, S, MID)
    att = jnp.sum(hid3 * w2_ref[...], axis=-1, keepdims=True) + b2_ref[...]  # (TB,S,1)

    # masked_fill(mask, -1e9)
    att = jnp.where(mask_ref[...] > 0.5, jnp.float32(-1e9), att)

    # softmax over the sequence axis (dim=1 in PyTorch)
    att = att - jnp.max(att, axis=1, keepdims=True)
    e = jnp.exp(att)
    denom = jnp.sum(e, axis=1, keepdims=True)             # (TB, 1, 1)
    r = pl.reciprocal(denom, approx=True)                 # EUP slot
    r = r * (2.0 - denom * r)                             # one Newton step -> ~1e-7 rel err
    att = e * r                                           # (TB, S, 1)

    # Only glimpse 0 is ever used (the PyTorch loop returns on i == 0).
    x_atted = jnp.sum(att * x3, axis=1)                   # (TB, H)

    # Merge Linear: (TB, H) @ (H, OUTP) — lane-dense store.
    o_ref[...] = (jnp.dot(x_atted, wm_ref[...],
                          preferred_element_type=jnp.float32) + bm_ref[...])


def _round_up(n, m):
    return ((n + m - 1) // m) * m


def _choose_tb(batch):
    """Batch block size: sublane-aligned, caps VMEM use, keeps >=2 grid steps
    for megacore when the batch allows it."""
    if batch <= 8:
        return batch
    tb = min(64, (batch // 2) // 8 * 8)
    return max(tb, 8)


def attflat(x, mask_f, w1, b1, w2, b2, wm, bm, *, tb=None):
    """x: (B,S,H) f32; mask_f: (B,S,1) f32 (1.0 = masked). Weights stored
    transposed relative to nn.Linear.weight. Returns (B, OUT) f32."""
    B, S, H = x.shape
    MID = w1.shape[1]
    G = w2.shape[1]
    OUT = wm.shape[1]
    assert G == 1, "AttFlat forward only ever uses glimpse 0 (early return in the loop)."
    assert wm.shape[0] == H * G

    # ---- pad to TPU-friendly shapes ------------------------------------
    s_pad = _round_up(S, 8)             # sublane alignment for the in-kernel reshape
    out_pad = _round_up(OUT, 128)       # lane-dense output stores
    if tb is None:
        tb = _choose_tb(B)
    tb = min(tb, B)
    if tb < B:
        tb = max(8, (tb // 8) * 8)      # interior blocks must be sublane-aligned
    b_pad = _round_up(B, tb)

    if s_pad != S:                      # padded positions are fully masked
        x = jnp.pad(x, ((0, 0), (0, s_pad - S), (0, 0)))
        mask_f = jnp.pad(mask_f, ((0, 0), (0, s_pad - S), (0, 0)), constant_values=1.0)
    if b_pad != B:                      # padded batch rows are masked + sliced off
        x = jnp.pad(x, ((0, b_pad - B), (0, 0), (0, 0)))
        mask_f = jnp.pad(mask_f, ((0, b_pad - B), (0, 0), (0, 0)), constant_values=1.0)
    if out_pad != OUT:                  # zero-pad merge weights so stores are full-width
        wm = jnp.pad(wm, ((0, 0), (0, out_pad - OUT)))
        bm = jnp.pad(bm, ((0, 0), (0, out_pad - OUT)))

    w2_row = w2.T                       # (1, MID): glimpse-0 weights as a lane row
    b2 = b2.reshape(1, 1)

    full = lambda shape: pl.BlockSpec(shape, lambda b: tuple(0 for _ in shape))

    out = pl.pallas_call(
        attflat_kernel,
        out_shape=jax.ShapeDtypeStruct((b_pad, out_pad), jnp.float32),
        grid_spec=pltpu.PrefetchScalarGridSpec(
            num_scalar_prefetch=0,
            grid=(b_pad // tb,),
            in_specs=[
                pl.BlockSpec((tb, s_pad, H), lambda b: (b, 0, 0)),   # x block
                pl.BlockSpec((tb, s_pad, 1), lambda b: (b, 0, 0)),   # mask block
                full((H, MID)),        # w1
                full((1, MID)),        # b1
                full((1, MID)),        # w2 row
                full((1, 1)),          # b2
                full((H, out_pad)),    # wm (padded)
                full((1, out_pad)),    # bm (padded)
            ],
            out_specs=pl.BlockSpec((tb, out_pad), lambda b: (b, 0)),
        ),
        compiler_params=pltpu.CompilerParams(
            dimension_semantics=("parallel",)),
    )(x, mask_f, w1, b1, w2_row, b2, wm, bm)

    return out[:B, :OUT]


def attflat_ref(x, mask_f, w1, b1, w2, b2, wm, bm):
    """Pure-JAX reference mirroring the PyTorch forward."""
    h = jnp.maximum(jnp.einsum("bsh,hm->bsm", x, w1) + b1, 0.0)
    att = jnp.einsum("bsm,mg->bsg", h, w2) + b2
    att = jnp.where(mask_f > 0.5, -1e9, att)
    att = jax.nn.softmax(att, axis=1)
    x_atted = jnp.sum(att[:, :, 0:1] * x, axis=1)          # (B, H)
    return x_atted @ wm + bm


if __name__ == "__main__":
    # opt: fusion_hidden_size=32, fusion_flat_mlp_size=64,
    #      fusion_flat_glimpses=1, fusion_flat_out_size=64, fusion_dropout=0.1 (eval -> no-op)
    B, S = 2, 8
    HIDDEN, MID, GLIMPSES, OUT = 32, 64, 1, 64

    key = jax.random.PRNGKey(0)
    k = jax.random.split(key, 8)

    x = jax.random.normal(k[0], (B, S, HIDDEN), dtype=jnp.float32)

    # mask: last 2 positions of batch 1 are masked (True in PyTorch -> 1.0 here)
    mask_bool = jnp.zeros((B, S), dtype=bool).at[1, -2:].set(True)
    mask_f = mask_bool.astype(jnp.float32)[:, :, None]        # (B, S, 1)

    # deterministic parameter init (stored transposed relative to nn.Linear.weight)
    w1 = jax.random.normal(k[1], (HIDDEN, MID), dtype=jnp.float32) * 0.05
    b1 = jax.random.normal(k[2], (1, MID), dtype=jnp.float32) * 0.05
    w2 = jax.random.normal(k[3], (MID, GLIMPSES), dtype=jnp.float32) * 0.05
    b2 = jax.random.normal(k[4], (1, GLIMPSES), dtype=jnp.float32) * 0.05
    wm = jax.random.normal(k[5], (HIDDEN * GLIMPSES, OUT), dtype=jnp.float32) * 0.05
    bm = jax.random.normal(k[6], (1, OUT), dtype=jnp.float32) * 0.05

    out = attflat(x, mask_f, w1, b1, w2, b2, wm, bm)
    out = jax.block_until_ready(out)

    ref = attflat_ref(x, mask_f, w1, b1, w2, b2, wm, bm)
    assert out.shape == (B, OUT)
    assert jnp.allclose(out, ref, atol=1e-4, rtol=1e-4), "mismatch vs reference"

    print("KERNEL_OK")
</pallas_src>

<mosaic_0001>
module attributes {stable_mosaic.version = 11 : i64} {
  func.func @attflat_kernel(%arg0: i32, %arg1: memref<2x8x32xf32, #tpu.memory_space<vmem>>, %arg2: memref<2x8x1xf32, #tpu.memory_space<vmem>>, %arg3: memref<32x64xf32, #tpu.memory_space<vmem>>, %arg4: memref<1x64xf32, #tpu.memory_space<vmem>>, %arg5: memref<1x64xf32, #tpu.memory_space<vmem>>, %arg6: memref<1x1xf32, #tpu.memory_space<vmem>>, %arg7: memref<32x128xf32, #tpu.memory_space<vmem>>, %arg8: memref<1x128xf32, #tpu.memory_space<vmem>>, %arg9: memref<2x128xf32, #tpu.memory_space<vmem>>) attributes {dimension_semantics = [#tpu.dimension_semantics<parallel>], iteration_bounds = array<i64: 1>, scalar_prefetch = 0 : i64, scratch_operands = 0 : i64, tpu.core_type = #tpu.core_type<tc>, window_params = [{transform_indices = @transform_0, window_bounds = array<i64: 2, 8, 32>}, {transform_indices = @transform_1, window_bounds = array<i64: 2, 8, 1>}, {pipeline_mode = #tpu.pipeline_mode<synchronous>, transform_indices = @transform_2, window_bounds = array<i64: 32, 64>}, {pipeline_mode = #tpu.pipeline_mode<synchronous>, transform_indices = @transform_3, window_bounds = array<i64: 1, 64>}, {pipeline_mode = #tpu.pipeline_mode<synchronous>, transform_indices = @transform_4, window_bounds = array<i64: 1, 64>}, {pipeline_mode = #tpu.pipeline_mode<synchronous>, transform_indices = @transform_5, window_bounds = array<i64: 1, 1>}, {pipeline_mode = #tpu.pipeline_mode<synchronous>, transform_indices = @transform_6, window_bounds = array<i64: 32, 128>}, {pipeline_mode = #tpu.pipeline_mode<synchronous>, transform_indices = @transform_7, window_bounds = array<i64: 1, 128>}, {transform_indices = @transform_8, window_bounds = array<i64: 2, 128>}]} {
    %c0 = arith.constant 0 : index
    %c0_0 = arith.constant 0 : index
    %c0_1 = arith.constant 0 : index
    %0 = vector.load %arg1[%c0, %c0_0, %c0_1] : memref<2x8x32xf32, #tpu.memory_space<vmem>>, vector<2x8x32xf32>
    %1 = vector.shape_cast %0 : vector<2x8x32xf32> to vector<16x32xf32>
    %c0_2 = arith.constant 0 : index
    %c0_3 = arith.constant 0 : index
    %2 = vector.load %arg3[%c0_2, %c0_3] : memref<32x64xf32, #tpu.memory_space<vmem>>, vector<32x64xf32>
    %cst = arith.constant dense<0.000000e+00> : vector<16x64xf32>
    %3 = tpu.matmul %1, %2, %cst {dimension_numbers = #tpu.dot_dimension_numbers<[1], [0], [0], [1], [0, 0, 1, 1], [], []>} : vector<16x32xf32>, vector<32x64xf32>, vector<16x64xf32> -> vector<16x64xf32>
    %c0_4 = arith.constant 0 : index
    %c0_5 = arith.constant 0 : index
    %4 = vector.load %arg4[%c0_4, %c0_5] : memref<1x64xf32, #tpu.memory_space<vmem>>, vector<1x64xf32>
    %5 = vector.broadcast %4 : vector<1x64xf32> to vector<16x64xf32>
    %6 = arith.addf %3, %5 : vector<16x64xf32>
    %cst_6 = arith.constant 0.000000e+00 : f32
    %7 = vector.broadcast %cst_6 : f32 to vector<16x64xf32>
    %8 = arith.maximumf %6, %7 : vector<16x64xf32>
    %9 = vector.shape_cast %8 : vector<16x64xf32> to vector<2x8x64xf32>
    %c0_7 = arith.constant 0 : index
    %c0_8 = arith.constant 0 : index
    %10 = vector.load %arg5[%c0_7, %c0_8] : memref<1x64xf32, #tpu.memory_space<vmem>>, vector<1x64xf32>
    %11 = vector.shape_cast %10 : vector<1x64xf32> to vector<1x1x64xf32>
    %12 = vector.broadcast %11 : vector<1x1x64xf32> to vector<2x8x64xf32>
    %13 = arith.mulf %9, %12 : vector<2x8x64xf32>
    %cst_9 = arith.constant dense<0.000000e+00> : vector<2x8xf32>
    %14 = vector.multi_reduction <add>, %13, %cst_9 [2] : vector<2x8x64xf32> to vector<2x8xf32>
    %15 = vector.shape_cast %14 : vector<2x8xf32> to vector<2x8x1xf32>
    %c0_10 = arith.constant 0 : index
    %c0_11 = arith.constant 0 : index
    %16 = vector.load %arg6[%c0_10, %c0_11] : memref<1x1xf32, #tpu.memory_space<vmem>>, vector<1x1xf32>
    %17 = vector.shape_cast %16 : vector<1x1xf32> to vector<1x1x1xf32>
    %18 = vector.broadcast %17 : vector<1x1x1xf32> to vector<2x8x1xf32>
    %19 = arith.addf %15, %18 : vector<2x8x1xf32>
    %c0_12 = arith.constant 0 : index
    %c0_13 = arith.constant 0 : index
    %c0_14 = arith.constant 0 : index
    %20 = vector.load %arg2[%c0_12, %c0_13, %c0_14] : memref<2x8x1xf32, #tpu.memory_space<vmem>>, vector<2x8x1xf32>
    %cst_15 = arith.constant 5.000000e-01 : f32
    %21 = vector.broadcast %cst_15 : f32 to vector<2x8x1xf32>
    %22 = arith.cmpf ogt, %20, %21 : vector<2x8x1xf32>
    %cst_16 = arith.constant -1.000000e+09 : f32
    %23 = vector.broadcast %cst_16 : f32 to vector<2x8x1xf32>
    %24 = arith.select %22, %23, %19 : vector<2x8x1xi1>, vector<2x8x1xf32>
    %cst_17 = arith.constant dense<0xFF800000> : vector<2x1xf32>
    %25 = vector.multi_reduction <maximumf>, %24, %cst_17 [1] : vector<2x8x1xf32> to vector<2x1xf32>
    %26 = vector.shape_cast %25 : vector<2x1xf32> to vector<2x1x1xf32>
    %27 = vector.broadcast %26 : vector<2x1x1xf32> to vector<2x8x1xf32>
    %28 = arith.subf %24, %27 : vector<2x8x1xf32>
    %29 = math.exp %28 : vector<2x8x1xf32>
    %cst_18 = arith.constant dense<0.000000e+00> : vector<2x1xf32>
    %30 = vector.multi_reduction <add>, %29, %cst_18 [1] : vector<2x8x1xf32> to vector<2x1xf32>
    %31 = vector.shape_cast %30 : vector<2x1xf32> to vector<2x1x1xf32>
    %32 = tpu.reciprocal %31 {approx = true} : vector<2x1x1xf32> -> vector<2x1x1xf32>
    %33 = arith.mulf %31, %32 : vector<2x1x1xf32>
    %cst_19 = arith.constant 2.000000e+00 : f32
    %34 = vector.broadcast %cst_19 : f32 to vector<2x1x1xf32>
    %35 = arith.subf %34, %33 : vector<2x1x1xf32>
    %36 = arith.mulf %32, %35 : vector<2x1x1xf32>
    %37 = vector.broadcast %36 : vector<2x1x1xf32> to vector<2x8x1xf32>
    %38 = arith.mulf %29, %37 : vector<2x8x1xf32>
    %39 = vector.broadcast %38 : vector<2x8x1xf32> to vector<2x8x32xf32>
    %40 = arith.mulf %39, %0 : vector<2x8x32xf32>
    %cst_20 = arith.constant dense<0.000000e+00> : vector<2x32xf32>
    %41 = vector.multi_reduction <add>, %40, %cst_20 [1] : vector<2x8x32xf32> to vector<2x32xf32>
    %c0_21 = arith.constant 0 : index
    %c0_22 = arith.constant 0 : index
    %42 = vector.load %arg7[%c0_21, %c0_22] : memref<32x128xf32, #tpu.memory_space<vmem>>, vector<32x128xf32>
    %cst_23 = arith.constant dense<0.000000e+00> : vector<2x128xf32>
    %43 = tpu.matmul %41, %42, %cst_23 {dimension_numbers = #tpu.dot_dimension_numbers<[1], [0], [0], [1], [0, 0, 1, 1], [], []>} : vector<2x32xf32>, vector<32x128xf32>, vector<2x128xf32> -> vector<2x128xf32>
    %c0_24 = arith.constant 0 : index
    %c0_25 = arith.constant 0 : index
    %44 = vector.load %arg8[%c0_24, %c0_25] : memref<1x128xf32, #tpu.memory_space<vmem>>, vector<1x128xf32>
    %45 = vector.broadcast %44 : vector<1x128xf32> to vector<2x128xf32>
    %46 = arith.addf %43, %45 : vector<2x128xf32>
    %c0_26 = arith.constant 0 : index
    %c0_27 = arith.constant 0 : index
    %47 = vector.load %arg9[%c0_26, %c0_27] : memref<2x128xf32, #tpu.memory_space<vmem>>, vector<2x128xf32>
    tpu.vector_store %arg9[%c0_26, %c0_27], %46 {strides = array<i32>} : memref<2x128xf32, #tpu.memory_space<vmem>>, vector<2x128xf32>,
    return
  }
  func.func @transform_0(%arg0: i32) -> (i32, i32, i32) {
    %c0_i32 = arith.constant 0 : i32
    %c0_i32_0 = arith.constant 0 : i32
    %c0_i32_1 = arith.constant 0 : i32
    return %arg0, %c0_i32, %c0_i32_0 : i32, i32, i32
  }
  func.func @transform_1(%arg0: i32) -> (i32, i32, i32) {
    %c0_i32 = arith.constant 0 : i32
    %c0_i32_0 = arith.constant 0 : i32
    %c0_i32_1 = arith.constant 0 : i32
    return %arg0, %c0_i32, %c0_i32_0 : i32, i32, i32
  }
  func.func @transform_2(%arg0: i32) -> (i32, i32) {
    %c0_i32 = arith.constant 0 : i32
    %c0_i32_0 = arith.constant 0 : i32
    %c0_i32_1 = arith.constant 0 : i32
    return %c0_i32, %c0_i32_0 : i32, i32
  }
  func.func @transform_3(%arg0: i32) -> (i32, i32) {
    %c0_i32 = arith.constant 0 : i32
    %c0_i32_0 = arith.constant 0 : i32
    %c0_i32_1 = arith.constant 0 : i32
    return %c0_i32, %c0_i32_0 : i32, i32
  }
  func.func @transform_4(%arg0: i32) -> (i32, i32) {
    %c0_i32 = arith.constant 0 : i32
    %c0_i32_0 = arith.constant 0 : i32
    %c0_i32_1 = arith.constant 0 : i32
    return %c0_i32, %c0_i32_0 : i32, i32
  }
  func.func @transform_5(%arg0: i32) -> (i32, i32) {
    %c0_i32 = arith.constant 0 : i32
    %c0_i32_0 = arith.constant 0 : i32
    %c0_i32_1 = arith.constant 0 : i32
    return %c0_i32, %c0_i32_0 : i32, i32
  }
  func.func @transform_6(%arg0: i32) -> (i32, i32) {
    %c0_i32 = arith.constant 0 : i32
    %c0_i32_0 = arith.constant 0 : i32
    %c0_i32_1 = arith.constant 0 : i32
    return %c0_i32, %c0_i32_0 : i32, i32
  }
  func.func @transform_7(%arg0: i32) -> (i32, i32) {
    %c0_i32 = arith.constant 0 : i32
    %c0_i32_0 = arith.constant 0 : i32
    %c0_i32_1 = arith.constant 0 : i32
    return %c0_i32, %c0_i32_0 : i32, i32
  }
  func.func @transform_8(%arg0: i32) -> (i32, i32) {
    %c0_i32 = arith.constant 0 : i32
    %c0_i32_0 = arith.constant 0 : i32
    return %arg0, %c0_i32 : i32, i32
  }
}

</mosaic_0001>

<llo_original>
// kernel: tpu_custom_call.1
$region0: #{tpu_custom_call.1}
  #allocation0 [shape = 'u32[]', space=smem, size = 0x4, offset = 0x4, fixed_abs, tag = 'smem constant byte address 0x4 - core index']
  #allocation1 [shape = 'u32[144,128]{1,0:T(1,128)}', space=vmem, size = 0x12000, scoped, tag = 'internal scratch']
  #allocation2 [shape = 'f32[1,1]{1,0:T(1,128)S(1)}', space=vmem, size = 0x200, scoped, tag = 'scoped memory for tpu_custom_call.1']
  %s0 = inlined_call_operand.hbm [shape: f32[2,8,32], index: 0, kind: input, shape index: {}]
  %s1 = inlined_call_operand.vmem [shape: f32[2,8,1], index: 1, kind: input, shape index: {}]
  %s2 = inlined_call_operand.hbm [shape: f32[32,64], index: 2, kind: input, shape index: {}]
  %s3 = inlined_call_operand.vmem [shape: f32[1,64], index: 3, kind: input, shape index: {}]
  %s4 = inlined_call_operand.vmem [shape: f32[1,64], index: 4, kind: input, shape index: {}]
  %s5 = inlined_call_operand.<no memory space> [shape: f32[1,1], index: 5, kind: input, shape index: {}]
  %s6 = inlined_call_operand.vmem [shape: f32[32,128], index: 6, kind: input, shape index: {}]
  %s7 = inlined_call_operand.vmem [shape: f32[1,128], index: 7, kind: input, shape index: {}]
  %s8 = inlined_call_operand.hbm [shape: f32[2,128], index: 8, kind: output, shape index: {}]
  %s9 = sld [smem:[#allocation0]]
  $region50: #{tpu_custom_call.1} parent=0
    _
  %s11 = ssub.s32 1, %s9
  %s12 = scalar_select 0, %s11, %s9
  %v13 = vstv %s5
  %14 = vst [vmem:[#allocation2] sm:$0x1] %v13
  $region1: #{tpu_custom_call.1} parent=0
    #allocation3 [shape = 'u8[8192]{0}', space=vmem, size = 0x2000, scoped, tag = 'input window, operand 0, single buffered']
    #allocation4 [shape = 's32[1]{0}', space=sflag, size = 0x4, scoped, tag = 'scoped memory for tpu_custom_call.1']
    #allocation5 [shape = 's32[1]{0}', space=sflag, size = 0x4, scoped, tag = 'scoped memory for tpu_custom_call.1']
    #allocation6 [shape = 'u8[16384]{0}', space=vmem, size = 0x4000, scoped, tag = 'input window, operand 2, single buffered']
    #allocation7 [shape = 's32[1]{0}', space=sflag, size = 0x4, scoped, tag = 'scoped memory for tpu_custom_call.1']
    #allocation8 [shape = 'u8[1024]{0}', space=vmem, size = 0x400, scoped, tag = 'output window, operand 0, single buffered']
    %15 = vsyncpa [#allocation4], 0
    %16 = vsyncpa [#allocation7], 0
    %17 = vsyncpa [#allocation5], 0
    // Predicated region
    $region2: #{tpu_custom_call.1} parent=1 // pred_check
      _
    $region3: #{tpu_custom_call.1} parent=1 // pred_check_branch
      %19 = sbr.rel (0) target = $region5
    $region4: #{tpu_custom_call.1} parent=1 // pred_region
      %s21 = ssub.s32 256, 256
      %22 = vsyncadd [#allocation4], %s21
      %s23 = sshll.u32 [#allocation3], 4
      %s24 = int_to_ptr.vmem [resolvable:$true] %s23
      %29 = dma.hbm_to_vmem [thread:$0]  %s0, 256, %s24, [#allocation4], 128, 128, 8
    $region5: #{tpu_custom_call.1} parent=1 // pred_fallthru
      _
    // Predicated region
    $region6: #{tpu_custom_call.1} parent=1 // pred_check
      _
    $region7: #{tpu_custom_call.1} parent=1 // pred_check_branch
      %31 = sbr.rel (0) target = $region9
    $region8: #{tpu_custom_call.1} parent=1 // pred_region
      _
    $region9: #{tpu_custom_call.1} parent=1 // pred_fallthru
      _
    // Predicated region
    $region10: #{tpu_custom_call.1} parent=1 // pred_check
      _
    $region11: #{tpu_custom_call.1} parent=1 // pred_check_branch
      %33 = sbr.rel (0) target = $region13
    $region12: #{tpu_custom_call.1} parent=1 // pred_region
      %s35 = ssub.s32 512, 512
      %36 = vsyncadd [#allocation7], %s35
      %s37 = sshll.u32 [#allocation6], 4
      %s38 = int_to_ptr.vmem [resolvable:$true] %s37
      %43 = dma.hbm_to_vmem [thread:$0]  %s2, 512, %s38, [#allocation7], 128, 128, 8
    $region13: #{tpu_custom_call.1} parent=1 // pred_fallthru
      _
    // Predicated region
    $region14: #{tpu_custom_call.1} parent=1 // pred_check
      _
    $region15: #{tpu_custom_call.1} parent=1 // pred_check_branch
      %45 = sbr.rel (0) target = $region17
    $region16: #{tpu_custom_call.1} parent=1 // pred_region
      _
    $region17: #{tpu_custom_call.1} parent=1 // pred_fallthru
      _
    // Predicated region
    $region18: #{tpu_custom_call.1} parent=1 // pred_check
      _
    $region19: #{tpu_custom_call.1} parent=1 // pred_check_branch
      %47 = sbr.rel (0) target = $region21
    $region20: #{tpu_custom_call.1} parent=1 // pred_region
      _
    $region21: #{tpu_custom_call.1} parent=1 // pred_fallthru
      _
    // Predicated region
    $region22: #{tpu_custom_call.1} parent=1 // pred_check
      _
    $region23: #{tpu_custom_call.1} parent=1 // pred_check_branch
      %49 = sbr.rel (0) target = $region25
    $region24: #{tpu_custom_call.1} parent=1 // pred_region
      _
    $region25: #{tpu_custom_call.1} parent=1 // pred_fallthru
      _
    // Predicated region
    $region26: #{tpu_custom_call.1} parent=1 // pred_check
      _
    $region27: #{tpu_custom_call.1} parent=1 // pred_check_branch
      %51 = sbr.rel (0) target = $region29
    $region28: #{tpu_custom_call.1} parent=1 // pred_region
      _
    $region29: #{tpu_custom_call.1} parent=1 // pred_fallthru
      _
    // Predicated region
    $region30: #{tpu_custom_call.1} parent=1 // pred_check
      _
    $region31: #{tpu_custom_call.1} parent=1 // pred_check_branch
      %53 = sbr.rel (0) target = $region33
    $region32: #{tpu_custom_call.1} parent=1 // pred_region
      _
    $region33: #{tpu_custom_call.1} parent=1 // pred_fallthru
      _
    // Predicated region
    $region34: #{tpu_custom_call.1} parent=1 // pred_check
      _
    $region35: #{tpu_custom_call.1} parent=1 // pred_check_branch
      %55 = sbr.rel (0) target = $region37
    $region36: #{tpu_custom_call.1} parent=1 // pred_region
      %56 = dma.done [#allocation4], 256
    $region37: #{tpu_custom_call.1} parent=1 // pred_fallthru
      _
    // Predicated region
    $region38: #{tpu_custom_call.1} parent=1 // pred_check
      _
    $region39: #{tpu_custom_call.1} parent=1 // pred_check_branch
      %58 = sbr.rel (0) target = $region41
    $region40: #{tpu_custom_call.1} parent=1 // pred_region
      %59 = dma.done [#allocation7], 512
    $region41: #{tpu_custom_call.1} parent=1 // pred_fallthru
      _
    %v60 = vld [vmem:[#allocation3] sm:$0xff]
    %v61 = vld [vmem:[#allocation3 + $0x8] sm:$0xff]
    %v62 = vld [vmem:[#allocation6] sm:$0xff]
    %v63 = vld [vmem:[#allocation6 + $0x8] sm:$0xff]
    %v64 = vld [vmem:[#allocation6 + $0x10] sm:$0xff]
    %v65 = vld [vmem:[#allocation6 + $0x18] sm:$0xff]
    %v66 = vld [vmem:[%s3] sm:$0x1]
    %v68 = vlaneseq
    %v69 = vshrl.u32 %v68, 7
    %v70 = vsub.s32 0, %v69
    %v71 = vrot.slane %v66, %v70
    %vm73 = vcmask 261120
    %v75 = vsel %vm73, %v60, 0
    %v78 = vsel %vm73, %v61, 0
    %80 = vmatprep.subr.mxu0 0.0
    %81 = vmatpush1.msra.mxu0 %v62
    %82 = vmatprep.subr.mxu0 0.0
    %83 = vmatpush1.msra.mxu0 %v63
    %84 = vmatprep.subr.mxu0 0.0
    %85 = vmatpush1.msra.mxu0 %v64
    %86 = vmatprep.subr.mxu0 0.0
    %87 = vmatpush1.msra.mxu0 %v65
    %88 = vmatprep.subr.mxu0 0.0
    %89 = vmatpush1.msra.mxu0 0.0
    %90 = vmatprep.subr.mxu0 0.0
    %91 = vmatpush1.msra.mxu0 0.0
    %92 = vmatprep.subr.mxu0 0.0
    %93 = vmatpush1.msra.mxu0 0.0
    %94 = vmatprep.subr.mxu0 0.0
    %95 = vmatpush1.msra.mxu0 0.0
    %96 = vmatprep.subr.mxu0 0.0
    %97 = vmatpush1.msra.mxu0 0.0
    %98 = vmatprep.subr.mxu0 0.0
    %99 = vmatpush1.msra.mxu0 0.0
    %100 = vmatprep.subr.mxu0 0.0
    %101 = vmatpush1.msra.mxu0 0.0
    %102 = vmatprep.subr.mxu0 0.0
    %103 = vmatpush1.msra.mxu0 0.0
    %104 = vmatprep.subr.mxu0 0.0
    %105 = vmatpush1.msra.mxu0 0.0
    %106 = vmatprep.subr.mxu0 0.0
    %107 = vmatpush1.msra.mxu0 0.0
    %108 = vmatprep.subr.mxu0 0.0
    %109 = vmatpush1.msra.mxu0 0.0
    %110 = vmatprep.subr.mxu0 0.0
    %111 = vmatpush1.msra.mxu0 0.0
    %112 = vmatprep.subr.mxu0 0.0
    %113 = vmatpush1.msra.mxu0 0.0
    %114 = vmatprep.subr.mxu0 0.0
    %115 = vmatpush1.msra.mxu0 0.0
    %116 = vmatprep.subr.mxu0 0.0
    %117 = vmatpush1.msra.mxu0 0.0
    %118 = vmatprep.subr.mxu0 0.0
    %119 = vmatpush1.msra.mxu0 0.0
    %120 = vmatprep.subr.mxu0 0.0
    %121 = vmatpush1.msra.mxu0 0.0
    %122 = vmatprep.subr.mxu0 0.0
    %123 = vmatpush1.msra.mxu0 0.0
    %124 = vmatprep.subr.mxu0 0.0
    %125 = vmatpush1.msra.mxu0 0.0
    %126 = vmatprep.subr.mxu0 0.0
    %127 = vmatpush1.msra.mxu0 0.0
    %128 = vmatprep.subr.mxu0 0.0
    %129 = vmatpush1.msra.mxu0 0.0
    %130 = vmatprep.subr.mxu0 0.0
    %131 = vmatpush1.msra.mxu0 0.0
    %132 = vmatprep.subr.mxu0 0.0
    %133 = vmatpush1.msra.mxu0 0.0
    %134 = vmatprep.subr.mxu0 0.0
    %135 = vmatpush1.msra.mxu0 0.0
    %136 = vmatprep.subr.mxu0 0.0
    %137 = vmatpush1.msra.mxu0 0.0
    %138 = vmatprep.subr.mxu0 0.0
    %139 = vmatpush1.msra.mxu0 0.0
    %140 = vmatprep.subr.mxu0 0.0
    %141 = vmatpush1.msra.mxu0 0.0
    %142 = vmatprep.subr.mxu0 0.0
    %143 = vmatpush1.msra.mxu0 0.0
    %144 = vmatprep.mubr.f32.mxu0 0.0
    %145 = vmatmul.mubr.f32.gmra.mrb[0].mxu0 %v75
    %v146 = vpop.f32.mrb[0].mxu0
    %v147 = vadd.f32 %v71, %v146
    %v148 = vpop.f32.mrb[0].mxu0
    %149 = vmatprep.mubr.f32.mxu0 0.0
    %150 = vmatmul.mubr.f32.gmra.mrb[0].mxu0 %v78
    %v151 = vpop.f32.mrb[0].mxu0
    %v152 = vadd.f32 %v71, %v151
    %v153 = vpop.f32.mrb[0].mxu0
    %154 = vdwg.mxu0
    %v155 = vmax.f32 %v147, 0.0
    %v156 = vmax.f32 %v152, 0.0
    %v157 = vld [vmem:[%s4] sm:$0x1]
    %v159 = vlaneseq
    %v160 = vshrl.u32 %v159, 7
    %v161 = vsub.s32 0, %v160
    %v162 = vrot.slane %v157, %v161
    %v164 = vmul.f32 %v155, %v162
    %v165 = vmul.f32 %v156, %v162
    %vm166 = vcmask 523264
    %v167 = vsel %vm166, %v164, 0.0
    %168 = vadd.xlane.f32.xlu0 %v167
    %v169 = vpop.xlane.xlu0 %168
    %v170 = vsel %vm166, %v165, 0.0
    %171 = vadd.xlane.f32.xlu0 %v170
    %v172 = vpop.xlane.xlu0 %171
    %v173 = vld [vmem:[#allocation2] sm:$0x1]
    %v175 = vlaneseq
    %v176 = vshrl.u32 %v175, 7
    %v177 = vsub.s32 0, %v176
    %v178 = vrot.slane %v173, %v177
    %v180 = vadd.f32 %v169, %v178
    %v181 = vadd.f32 %v172, %v178
    %v182 = vld [vmem:[%s1] sm:$0xff]
    %v183 = vld [vmem:[%s1 + $0x8] sm:$0xff]
    %vm184 = vcmp.gt.f32.partialorder %v182, 0.5
    %vm185 = vcmp.gt.f32.partialorder %v183, 0.5
    %v186 = vsel %vm184, -1e+09, %v180
    %v187 = vsel %vm185, -1e+09, %v181
    %vm188 = vcmask 7168
    %v189 = vsel %vm188, %v186, -inf
    %v190 = vrot.slane %v189, 4
    %v191 = vmax.f32 %v189, %v190
    %v192 = vrot.slane %v191, 2
    %v193 = vmax.f32 %v191, %v192
    %v194 = vrot.slane %v193, 1
    %v195 = vmax.f32 %v193, %v194
    %v196 = vsel %vm188, %v187, -inf
    %v197 = vrot.slane %v196, 4
    %v198 = vmax.f32 %v196, %v197
    %v199 = vrot.slane %v198, 2
    %v200 = vmax.f32 %v198, %v199
    %v201 = vrot.slane %v200, 1
    %v202 = vmax.f32 %v200, %v201
    %v203 = vsub.f32 %v186, %v195
    %v204 = vsub.f32 %v187, %v202
    %v205 = vmul.f32 %v203, 1.442695
    %v206 = vpow.pop %v205
    %v207 = vmul.f32 %v204, 1.442695
    %v208 = vpow.pop %v207
    %v209 = vsel %vm188, %v206, 0.0
    %v210 = vrot.slane %v209, 4
    %v211 = vadd.f32 %v209, %v210
    %v212 = vrot.slane %v211, 2
    %v213 = vadd.f32 %v211, %v212
    %v214 = vrot.slane %v213, 1
    %v215 = vadd.f32 %v213, %v214
    %v216 = vsel %vm188, %v208, 0.0
    %v217 = vrot.slane %v216, 4
    %v218 = vadd.f32 %v216, %v217
    %v219 = vrot.slane %v218, 2
    %v220 = vadd.f32 %v218, %v219
    %v221 = vrot.slane %v220, 1
    %v222 = vadd.f32 %v220, %v221
    %v223 = vrcp.pop %v215
    %v224 = vrcp.pop %v222
    %v225 = vmul.f32 %v215, %v223
    %v226 = vmul.f32 %v222, %v224
    %v227 = vsub.f32 2.0, %v225
    %v228 = vsub.f32 2.0, %v226
    %v229 = vmul.f32 %v223, %v227
    %v230 = vmul.f32 %v224, %v228
    %v231 = vmul.f32 %v206, %v229
    %v232 = vmul.f32 %v208, %v230
    %234 = vset.pattern.permute.xlu0 0
    %235 = vperm.xlu0 %234, %v231
    %v236 = vpop.permute.xlu0 %235
    %239 = vset.pattern.permute.xlu0 0
    %240 = vperm.xlu0 %239, %v232
    %v241 = vpop.permute.xlu0 %240
    %v243 = vmul.f32 %v236, %v60
    %v244 = vmul.f32 %v241, %v61
    %v245 = vsel %vm73, %v243, 0.0
    %v246 = vrot.slane %v245, 4
    %v247 = vadd.f32 %v245, %v246
    %v248 = vrot.slane %v247, 2
    %v249 = vadd.f32 %v247, %v248
    %v250 = vrot.slane %v249, 1
    %v251 = vadd.f32 %v249, %v250
    %v252 = vsel %vm73, %v244, 0.0
    %v253 = vrot.slane %v252, 4
    %v254 = vadd.f32 %v252, %v253
    %v255 = vrot.slane %v254, 2
    %v256 = vadd.f32 %v254, %v255
    %v257 = vrot.slane %v256, 1
    %v258 = vadd.f32 %v256, %v257
    %v259 = vld [vmem:[%s6] sm:$0xff]
    %v260 = vld [vmem:[%s6 + $0x8] sm:$0xff]
    %v261 = vld [vmem:[%s6 + $0x10] sm:$0xff]
    %v262 = vld [vmem:[%s6 + $0x18] sm:$0xff]
    %v263 = vld [vmem:[%s7] sm:$0x1]
    %v265 = vlaneseq
    %v266 = vshrl.u32 %v265, 7
    %v267 = vsub.s32 0, %v266
    %v268 = vrot.slane %v263, %v267
    %vm272 = vcmask 1041409
    %v273 = vsel %vm272, %v258, %v251
    %v274 = vsel %vm73, %v273, 0
    %276 = vmatprep.subr.mxu0 0.0
    %277 = vmatpush1.msra.mxu0 %v259
    %278 = vmatprep.subr.mxu0 0.0
    %279 = vmatpush1.msra.mxu0 %v260
    %280 = vmatprep.subr.mxu0 0.0
    %281 = vmatpush1.msra.mxu0 %v261
    %282 = vmatprep.subr.mxu0 0.0
    %283 = vmatpush1.msra.mxu0 %v262
    %284 = vmatprep.subr.mxu0 0.0
    %285 = vmatpush1.msra.mxu0 0.0
    %286 = vmatprep.subr.mxu0 0.0
    %287 = vmatpush1.msra.mxu0 0.0
    %288 = vmatprep.subr.mxu0 0.0
    %289 = vmatpush1.msra.mxu0 0.0
    %290 = vmatprep.subr.mxu0 0.0
    %291 = vmatpush1.msra.mxu0 0.0
    %292 = vmatprep.subr.mxu0 0.0
    %293 = vmatpush1.msra.mxu0 0.0
    %294 = vmatprep.subr.mxu0 0.0
    %295 = vmatpush1.msra.mxu0 0.0
    %296 = vmatprep.subr.mxu0 0.0
    %297 = vmatpush1.msra.mxu0 0.0
    %298 = vmatprep.subr.mxu0 0.0
    %299 = vmatpush1.msra.mxu0 0.0
    %300 = vmatprep.subr.mxu0 0.0
    %301 = vmatpush1.msra.mxu0 0.0
    %302 = vmatprep.subr.mxu0 0.0
    %303 = vmatpush1.msra.mxu0 0.0
    %304 = vmatprep.subr.mxu0 0.0
    %305 = vmatpush1.msra.mxu0 0.0
    %306 = vmatprep.subr.mxu0 0.0
    %307 = vmatpush1.msra.mxu0 0.0
    %308 = vmatprep.subr.mxu0 0.0
    %309 = vmatpush1.msra.mxu0 0.0
    %310 = vmatprep.subr.mxu0 0.0
    %311 = vmatpush1.msra.mxu0 0.0
    %312 = vmatprep.subr.mxu0 0.0
    %313 = vmatpush1.msra.mxu0 0.0
    %314 = vmatprep.subr.mxu0 0.0
    %315 = vmatpush1.msra.mxu0 0.0
    %316 = vmatprep.subr.mxu0 0.0
    %317 = vmatpush1.msra.mxu0 0.0
    %318 = vmatprep.subr.mxu0 0.0
    %319 = vmatpush1.msra.mxu0 0.0
    %320 = vmatprep.subr.mxu0 0.0
    %321 = vmatpush1.msra.mxu0 0.0
    %322 = vmatprep.subr.mxu0 0.0
    %323 = vmatpush1.msra.mxu0 0.0
    %324 = vmatprep.subr.mxu0 0.0
    %325 = vmatpush1.msra.mxu0 0.0
    %326 = vmatprep.subr.mxu0 0.0
    %327 = vmatpush1.msra.mxu0 0.0
    %328 = vmatprep.subr.mxu0 0.0
    %329 = vmatpush1.msra.mxu0 0.0
    %330 = vmatprep.subr.mxu0 0.0
    %331 = vmatpush1.msra.mxu0 0.0
    %332 = vmatprep.subr.mxu0 0.0
    %333 = vmatpush1.msra.mxu0 0.0
    %334 = vmatprep.subr.mxu0 0.0
    %335 = vmatpush1.msra.mxu0 0.0
    %336 = vmatprep.subr.mxu0 0.0
    %337 = vmatpush1.msra.mxu0 0.0
    %338 = vmatprep.subr.mxu0 0.0
    %339 = vmatpush1.msra.mxu0 0.0
    %340 = vmatprep.mubr.f32.mxu0 0.0
    %341 = vmatmul.mubr.f32.gmra.mrb[0].mxu0 %v274
    %v342 = vpop.f32.mrb[0].mxu0
    %v343 = vadd.f32 %v268, %v342
    %v344 = vpop.f32.mrb[0].mxu0
    %345 = vdwg.mxu0
    %346 = vst [vmem:[#allocation8] sm:$0x3] %v343
    // Predicated region
    $region42: #{tpu_custom_call.1} parent=1 // pred_check
      _
    $region43: #{tpu_custom_call.1} parent=1 // pred_check_branch
      %348 = sbr.rel (0) target = $region45
    $region44: #{tpu_custom_call.1} parent=1 // pred_region
      %s350 = ssub.s32 32, 32
      %351 = vsyncadd [#allocation5], %s350
      %s353 = sshll.u32 [#allocation8], 4
      %s354 = int_to_ptr.vmem [resolvable:$true] %s353
      %356 = dma.vmem_to_hbm [thread:$0]  %s354, 32, %s8, [#allocation5]
    $region45: #{tpu_custom_call.1} parent=1 // pred_fallthru
      _
    // Predicated region
    $region46: #{tpu_custom_call.1} parent=1 // pred_check
      _
    $region47: #{tpu_custom_call.1} parent=1 // pred_check_branch
      %358 = sbr.rel (0) target = $region49
    $region48: #{tpu_custom_call.1} parent=1 // pred_region
      %359 = dma.done [#allocation5], 32
    $region49: #{tpu_custom_call.1} parent=1 // pred_fallthru
      _
    %360 = vsyncpa [#allocation4], 1
    %361 = vsyncpa [#allocation7], 1
    %362 = vsyncpa [#allocation5], 1

</llo_original>
